<compile_context>
chip_gen: v7x
topology: tpu7x:2x2x1
jax: 0.10.0
libtpu: 0.0.40
codegen_flags: <defaults>
</compile_context>

<pallas_src>
import jax
import jax.numpy as jnp
from jax import lax
from jax.experimental import pallas as pl
from jax.experimental.pallas import tpu as pltpu

EPS = 1e-7


def _gln_kernel(y_ref, gamma_ref, beta_ref, o_ref):
    # y_ref:     (N, K) slab for one batch element (batch dim squeezed).
    # gamma_ref: (N, 1) per-channel scale.
    # beta_ref:  (N, 1) per-channel shift.
    y = y_ref[...].astype(jnp.float32)
    n_elems = y.shape[0] * y.shape[1]
    inv_count = jnp.float32(1.0 / n_elems)

    # Single fused sweep over the slab: sum and sum-of-squares together.
    s = jnp.sum(y)
    ss = jnp.sum(y * y)
    mean = s * inv_count
    var = jnp.maximum(ss * inv_count - mean * mean, 0.0)  # guard f32 cancellation

    # Scalar rsqrt goes to the EUP (otherwise-idle slot); fold everything into a
    # per-channel scale/shift so the per-element work is one mul + one add.
    inv_std = lax.rsqrt(var + EPS)
    gamma = gamma_ref[...].astype(jnp.float32)   # (N, 1)
    beta = beta_ref[...].astype(jnp.float32)     # (N, 1)
    scale = gamma * inv_std                      # (N, 1)
    shift = beta - mean * scale                  # (N, 1)

    o_ref[...] = (y * scale + shift).astype(o_ref.dtype)


def global_layer_norm(y, gamma, beta):
    """y: [M, N, K]; gamma/beta: [1, N, 1]. Returns [M, N, K]."""
    M, N, K = y.shape

    # VMEM budget: double-buffered input + output slabs plus the in-kernel f32
    # working copy; raise the scoped limit above the 16/32 MiB default, but
    # clamp so we stay under v7x's 64 MiB physical VMEM for moderate slabs.
    slab_bytes = N * K * jnp.dtype(y.dtype).itemsize
    vmem_bytes = 4 * slab_bytes + 2 * (N * K * 4) + (2 << 20)
    vmem_bytes = int(min(max(vmem_bytes, 32 << 20), 100 << 20))
    # TODO(synk): for production Conv-TasNet shapes where one (N, K) slab does
    # not fit VMEM (notably v7x, 64 MiB physical), switch to a K-tiled two-phase
    # variant (stats-accumulation pass + apply pass).

    return pl.pallas_call(
        _gln_kernel,
        out_shape=jax.ShapeDtypeStruct((M, N, K), y.dtype),
        grid_spec=pltpu.PrefetchScalarGridSpec(
            num_scalar_prefetch=0,
            grid=(M,),
            in_specs=[
                pl.BlockSpec((None, N, K), lambda i: (i, 0, 0)),  # y slab
                pl.BlockSpec((None, N, 1), lambda i: (0, 0, 0)),  # gamma
                pl.BlockSpec((None, N, 1), lambda i: (0, 0, 0)),  # beta
            ],
            out_specs=pl.BlockSpec((None, N, K), lambda i: (i, 0, 0)),
        ),
        compiler_params=pltpu.CompilerParams(
            dimension_semantics=("parallel",),
            vmem_limit_bytes=vmem_bytes,
        ),
    )(y, gamma, beta)


def _reference(y, gamma, beta):
    mean = y.mean(axis=1, keepdims=True).mean(axis=2, keepdims=True)
    var = ((y - mean) ** 2).mean(axis=1, keepdims=True).mean(axis=2, keepdims=True)
    return gamma * (y - mean) / jnp.sqrt(var + EPS) + beta


if __name__ == "__main__":
    # Small but lane-dense shapes: K multiple of 128 keeps stores unmasked,
    # N multiple of 8 keeps sublane tiling clean.
    M, N, K = 2, 8, 256  # batch, channels, length

    key = jax.random.PRNGKey(0)
    k_y, k_g, k_b = jax.random.split(key, 3)
    y = jax.random.normal(k_y, (M, N, K), dtype=jnp.float32)

    # Module init is gamma=1, beta=0 (reset_parameters); perturb slightly so the
    # folded scale/shift path is actually exercised.
    gamma = 1.0 + 0.1 * jax.random.normal(k_g, (1, N, 1), dtype=jnp.float32)
    beta = 0.1 * jax.random.normal(k_b, (1, N, 1), dtype=jnp.float32)

    out = jax.block_until_ready(global_layer_norm(y, gamma, beta))
    ref = _reference(y, gamma, beta)

    assert out.shape == (M, N, K)
    assert jnp.allclose(out, ref, atol=1e-4, rtol=1e-4), float(
        jnp.max(jnp.abs(out - ref))
    )

    print("KERNEL_OK")
</pallas_src>

<mosaic_0001>
module attributes {stable_mosaic.version = 11 : i64} {
  func.func @_gln_kernel(%arg0: i32, %arg1: memref<1x8x256xf32, #tpu.memory_space<vmem>>, %arg2: memref<1x8x1xf32, #tpu.memory_space<vmem>>, %arg3: memref<1x8x1xf32, #tpu.memory_space<vmem>>, %arg4: memref<1x8x256xf32, #tpu.memory_space<vmem>>) attributes {dimension_semantics = [#tpu.dimension_semantics<parallel>], iteration_bounds = array<i64: 2>, scalar_prefetch = 0 : i64, scratch_operands = 0 : i64, tpu.core_type = #tpu.core_type<tc>, window_params = [{transform_indices = @transform_0, window_bounds = array<i64: 1, 8, 256>}, {pipeline_mode = #tpu.pipeline_mode<synchronous>, transform_indices = @transform_1, window_bounds = array<i64: 1, 8, 1>}, {pipeline_mode = #tpu.pipeline_mode<synchronous>, transform_indices = @transform_2, window_bounds = array<i64: 1, 8, 1>}, {transform_indices = @transform_3, window_bounds = array<i64: 1, 8, 256>}]} {
    %c0 = arith.constant 0 : index
    %c0_0 = arith.constant 0 : index
    %c0_1 = arith.constant 0 : index
    %0 = vector.load %arg1[%c0, %c0_0, %c0_1] : memref<1x8x256xf32, #tpu.memory_space<vmem>>, vector<1x8x256xf32>
    %1 = vector.shape_cast %0 : vector<1x8x256xf32> to vector<8x256xf32>
    %2 = vector.shape_cast %1 : vector<8x256xf32> to vector<1x8x256xf32>
    %cst = arith.constant dense<0.000000e+00> : vector<1xf32>
    %3 = vector.multi_reduction <add>, %2, %cst [1, 2] : vector<1x8x256xf32> to vector<1xf32>
    %4 = vector.shape_cast %3 : vector<1xf32> to vector<1x1x1xf32>
    %5 = vector.extract %4[0, 0, 0] : f32 from vector<1x1x1xf32>
    %6 = arith.mulf %1, %1 : vector<8x256xf32>
    %7 = vector.shape_cast %6 : vector<8x256xf32> to vector<1x8x256xf32>
    %cst_2 = arith.constant dense<0.000000e+00> : vector<1xf32>
    %8 = vector.multi_reduction <add>, %7, %cst_2 [1, 2] : vector<1x8x256xf32> to vector<1xf32>
    %9 = vector.shape_cast %8 : vector<1xf32> to vector<1x1x1xf32>
    %10 = vector.extract %9[0, 0, 0] : f32 from vector<1x1x1xf32>
    %cst_3 = arith.constant 4.8828125E-4 : f32
    %11 = arith.mulf %5, %cst_3 : f32
    %cst_4 = arith.constant 4.8828125E-4 : f32
    %12 = arith.mulf %10, %cst_4 : f32
    %13 = arith.mulf %11, %11 : f32
    %14 = arith.subf %12, %13 : f32
    %cst_5 = arith.constant 0.000000e+00 : f32
    %15 = arith.maximumf %14, %cst_5 : f32
    %cst_6 = arith.constant 1.000000e-07 : f32
    %16 = arith.addf %15, %cst_6 : f32
    %17 = math.rsqrt %16 : f32
    %c0_7 = arith.constant 0 : index
    %c0_8 = arith.constant 0 : index
    %c0_9 = arith.constant 0 : index
    %18 = vector.load %arg2[%c0_7, %c0_8, %c0_9] : memref<1x8x1xf32, #tpu.memory_space<vmem>>, vector<1x8x1xf32>
    %19 = vector.shape_cast %18 : vector<1x8x1xf32> to vector<8x1xf32>
    %c0_10 = arith.constant 0 : index
    %c0_11 = arith.constant 0 : index
    %c0_12 = arith.constant 0 : index
    %20 = vector.load %arg3[%c0_10, %c0_11, %c0_12] : memref<1x8x1xf32, #tpu.memory_space<vmem>>, vector<1x8x1xf32>
    %21 = vector.shape_cast %20 : vector<1x8x1xf32> to vector<8x1xf32>
    %22 = vector.broadcast %17 : f32 to vector<8x1xf32>
    %23 = arith.mulf %19, %22 : vector<8x1xf32>
    %24 = vector.broadcast %11 : f32 to vector<8x1xf32>
    %25 = arith.mulf %24, %23 : vector<8x1xf32>
    %26 = arith.subf %21, %25 : vector<8x1xf32>
    %27 = vector.broadcast %23 : vector<8x1xf32> to vector<8x256xf32>
    %28 = arith.mulf %1, %27 : vector<8x256xf32>
    %29 = vector.broadcast %26 : vector<8x1xf32> to vector<8x256xf32>
    %30 = arith.addf %28, %29 : vector<8x256xf32>
    %c0_13 = arith.constant 0 : index
    %c0_14 = arith.constant 0 : index
    %c0_15 = arith.constant 0 : index
    %31 = vector.load %arg4[%c0_13, %c0_14, %c0_15] : memref<1x8x256xf32, #tpu.memory_space<vmem>>, vector<1x8x256xf32>
    %32 = vector.shape_cast %31 : vector<1x8x256xf32> to vector<8x256xf32>
    %33 = vector.shape_cast %30 : vector<8x256xf32> to vector<1x8x256xf32>
    tpu.vector_store %arg4[%c0_13, %c0_14, %c0_15], %33 {strides = array<i32>} : memref<1x8x256xf32, #tpu.memory_space<vmem>>, vector<1x8x256xf32>,
    return
  }
  func.func @transform_0(%arg0: i32) -> (i32, i32, i32) {
    %c0_i32 = arith.constant 0 : i32
    %c0_i32_0 = arith.constant 0 : i32
    %c0_i32_1 = arith.constant 0 : i32
    return %arg0, %c0_i32, %c0_i32_0 : i32, i32, i32
  }
  func.func @transform_1(%arg0: i32) -> (i32, i32, i32) {
    %c0_i32 = arith.constant 0 : i32
    %c0_i32_0 = arith.constant 0 : i32
    %c0_i32_1 = arith.constant 0 : i32
    %c0_i32_2 = arith.constant 0 : i32
    return %c0_i32, %c0_i32_0, %c0_i32_1 : i32, i32, i32
  }
  func.func @transform_2(%arg0: i32) -> (i32, i32, i32) {
    %c0_i32 = arith.constant 0 : i32
    %c0_i32_0 = arith.constant 0 : i32
    %c0_i32_1 = arith.constant 0 : i32
    %c0_i32_2 = arith.constant 0 : i32
    return %c0_i32, %c0_i32_0, %c0_i32_1 : i32, i32, i32
  }
  func.func @transform_3(%arg0: i32) -> (i32, i32, i32) {
    %c0_i32 = arith.constant 0 : i32
    %c0_i32_0 = arith.constant 0 : i32
    %c0_i32_1 = arith.constant 0 : i32
    return %arg0, %c0_i32, %c0_i32_0 : i32, i32, i32
  }
}

</mosaic_0001>

<llo_original>
// kernel: tpu_custom_call.1
$region0: #{tpu_custom_call.1}
  #allocation0 [shape = 'u32[]', space=smem, size = 0x4, offset = 0x4, fixed_abs, tag = 'smem constant byte address 0x4 - core index']
  #allocation1 [shape = 'u32[144,128]{1,0:T(1,128)}', space=vmem, size = 0x12000, scoped, tag = 'internal scratch']
  %s0 = inlined_call_operand.hbm [shape: f32[2,8,256], index: 0, kind: input, shape index: {}]
  %s1 = inlined_call_operand.vmem [shape: f32[1,8,1], index: 1, kind: input, shape index: {}]
  %s2 = inlined_call_operand.vmem [shape: f32[1,8,1], index: 2, kind: input, shape index: {}]
  %s3 = inlined_call_operand.hbm [shape: f32[2,8,256], index: 3, kind: output, shape index: {}]
  %s4 = sld [smem:[#allocation0]]
  $region49: #{tpu_custom_call.1} parent=0
    _
  %s6 = ssub.s32 1, %s4
  %s7 = scalar_select 0, %s6, %s4
  $region1: #{tpu_custom_call.1} parent=0
    #allocation2 [shape = 'u8[16384]{0}', space=vmem, size = 0x4000, scoped, tag = 'input window, operand 0']
    #allocation3 [shape = 's32[2]{0}', space=sflag, size = 0x8, scoped, tag = 'scoped memory for tpu_custom_call.1']
    #allocation4 [shape = 's32[2]{0}', space=sflag, size = 0x8, scoped, tag = 'scoped memory for tpu_custom_call.1']
    #allocation5 [shape = 'u8[16384]{0}', space=vmem, size = 0x4000, scoped, tag = 'output window, operand 0']
    %8 = vsyncpa [#allocation3], 0
    %s9 = scalar_lea.sflag [#allocation3], 1
    %10 = vsyncpa %s9, 0
    %11 = vsyncpa [#allocation4], 0
    %s12 = scalar_lea.sflag [#allocation4], 1
    %13 = vsyncpa %s12, 0
    loop: start=0, step=1, limit=4
    $region2: #{tpu_custom_call.1} parent=1 // loop_pre_header
      _
    $region3: #{tpu_custom_call.1} parent=1 // loop_header
      %s15 = sphi 0, %s19
      %p16 = scmp.ge.s32.totalorder %s15, 4
      %s25 = sphi 0, %s27
      %s28 = sphi 0, %s25
      %s29 = sphi 0, %s28
      %s45 = sphi 0, %s29
      %s49 = sphi 0, %s49
      %s51 = sphi 0, %s49
      %s52 = sphi 0, %s51
      %s66 = sphi 0, %s52
      %s70 = sphi 0, %s70
      %s72 = sphi 0, %s70
      %s73 = sphi 0, %s72
      %s87 = sphi 0, %s73
      %s93 = sphi 0, %s95
      %s96 = sphi 0, %s93
      %s97 = sphi 0, %s96
      %s113 = sphi 0, %s97
    $region4: #{tpu_custom_call.1} parent=1 // loop_header_branch
      %18 = sbr.rel (%p16) target = $region8
    $region5: #{tpu_custom_call.1} parent=1 // loop_body
      %s20 = ssub.s32 %s15, 1
      %s21 = ssub.s32 %s15, 2
      %s22 = sadd.s32 %s15, 1
      %s23 = ssub.s32 %s15, %s22
      %p24 = scmp.eq.s32.totalorder %s23, 0
      %s26 = sadd.s32 %s25, 1
      %s27 = scalar_select %p24, %s25, %s26
      %p30 = pneg %p24
      %p31 = scmp.eq.s32.totalorder %s15, 1
      %p32 = por %p30, %p31
      %p33 = scmp.ne.s32.totalorder %s25, %s28
      %p34 = scmp.eq.s32.totalorder %s15, 0
      %p35 = por %p33, %p34
      %p36 = scmp.ne.s32.totalorder %s25, %s28
      %p37 = scmp.eq.s32.totalorder %s20, 1
      %p38 = por %p36, %p37
      %p39 = scmp.ne.s32.totalorder %s28, %s29
      %p40 = scmp.eq.s32.totalorder %s20, 0
      %p41 = por %p39, %p40
      %p42 = scmp.ne.s32.totalorder %s28, %s29
      %p43 = scmp.eq.s32.totalorder %s21, 1
      %p44 = por %p42, %p43
      %p46 = scmp.ne.s32.totalorder %s29, %s45
      %p47 = scmp.eq.s32.totalorder %s21, 0
      %p48 = por %p46, %p47
      %s50 = sadd.s32 %s49, 1
      %p53 = scmp.eq.s32.totalorder %s15, 1
      %p54 = scmp.ne.s32.totalorder %s49, %s51
      %p55 = scmp.eq.s32.totalorder %s15, 0
      %p56 = por %p54, %p55
      %p57 = scmp.ne.s32.totalorder %s49, %s51
      %p58 = scmp.eq.s32.totalorder %s20, 1
      %p59 = por %p57, %p58
      %p60 = scmp.ne.s32.totalorder %s51, %s52
      %p61 = scmp.eq.s32.totalorder %s20, 0
      %p62 = por %p60, %p61
      %p63 = scmp.ne.s32.totalorder %s51, %s52
      %p64 = scmp.eq.s32.totalorder %s21, 1
      %p65 = por %p63, %p64
      %p67 = scmp.ne.s32.totalorder %s52, %s66
      %p68 = scmp.eq.s32.totalorder %s21, 0
      %p69 = por %p67, %p68
      %s71 = sadd.s32 %s70, 1
      %p74 = scmp.eq.s32.totalorder %s15, 1
      %p75 = scmp.ne.s32.totalorder %s70, %s72
      %p76 = scmp.eq.s32.totalorder %s15, 0
      %p77 = por %p75, %p76
      %p78 = scmp.ne.s32.totalorder %s70, %s72
      %p79 = scmp.eq.s32.totalorder %s20, 1
      %p80 = por %p78, %p79
      %p81 = scmp.ne.s32.totalorder %s72, %s73
      %p82 = scmp.eq.s32.totalorder %s20, 0
      %p83 = por %p81, %p82
      %p84 = scmp.ne.s32.totalorder %s72, %s73
      %p85 = scmp.eq.s32.totalorder %s21, 1
      %p86 = por %p84, %p85
      %p88 = scmp.ne.s32.totalorder %s73, %s87
      %p89 = scmp.eq.s32.totalorder %s21, 0
      %p90 = por %p88, %p89
      %s91 = ssub.s32 %s15, %s22
      %p92 = scmp.eq.s32.totalorder %s91, 0
      %s94 = sadd.s32 %s93, 1
      %s95 = scalar_select %p92, %s93, %s94
      %p98 = pneg %p92
      %p99 = scmp.eq.s32.totalorder %s15, 1
      %p100 = por %p98, %p99
      %p101 = scmp.ne.s32.totalorder %s93, %s96
      %p102 = scmp.eq.s32.totalorder %s15, 0
      %p103 = por %p101, %p102
      %p104 = scmp.ne.s32.totalorder %s93, %s96
      %p105 = scmp.eq.s32.totalorder %s20, 1
      %p106 = por %p104, %p105
      %p107 = scmp.ne.s32.totalorder %s96, %s97
      %p108 = scmp.eq.s32.totalorder %s20, 0
      %p109 = por %p107, %p108
      %p110 = scmp.ne.s32.totalorder %s96, %s97
      %p111 = scmp.eq.s32.totalorder %s21, 1
      %p112 = por %p110, %p111
      %p114 = scmp.ne.s32.totalorder %s97, %s113
      %p115 = scmp.eq.s32.totalorder %s21, 0
      %p116 = por %p114, %p115
      %p117 = scmp.le.s32.totalorder 1, %s15
      %p118 = scmp.lt.s32.totalorder %s15, 3
      %p119 = pnand %p117, %p118
      %p120 = pneg %p119
      // Predicated region
      $region9: #{tpu_custom_call.1} parent=5 // pred_check
        _
      $region10: #{tpu_custom_call.1} parent=5 // pred_check_branch
        %122 = sbr.rel (%p119) target = $region12
      $region11: #{tpu_custom_call.1} parent=5 // pred_region
        %s123 = ssub.s32 %s15, 1
        // Predicated region
        $region13: #{tpu_custom_call.1} parent=11 // pred_check
          %p124 = pneg %p62
        $region14: #{tpu_custom_call.1} parent=11 // pred_check_branch
          %126 = sbr.rel (%p124) target = $region16
        $region15: #{tpu_custom_call.1} parent=11 // pred_region
          _
        $region16: #{tpu_custom_call.1} parent=11 // pred_fallthru
          _
        // Predicated region
        $region17: #{tpu_custom_call.1} parent=11 // pred_check
          %p127 = pneg %p83
        $region18: #{tpu_custom_call.1} parent=11 // pred_check_branch
          %129 = sbr.rel (%p127) target = $region20
        $region19: #{tpu_custom_call.1} parent=11 // pred_region
          _
        $region20: #{tpu_custom_call.1} parent=11 // pred_fallthru
          _
      $region12: #{tpu_custom_call.1} parent=5 // pred_fallthru
        _
      %p130 = scmp.lt.s32.totalorder %s15, 2
      // Predicated region
      $region21: #{tpu_custom_call.1} parent=5 // pred_check
        %p131 = pneg %p130
      $region22: #{tpu_custom_call.1} parent=5 // pred_check_branch
        %133 = sbr.rel (%p131) target = $region24
      $region23: #{tpu_custom_call.1} parent=5 // pred_region
        // Predicated region
        $region25: #{tpu_custom_call.1} parent=23 // pred_check
          %p134 = pneg %p35
        $region26: #{tpu_custom_call.1} parent=23 // pred_check_branch
          %136 = sbr.rel (%p134) target = $region28
        $region27: #{tpu_custom_call.1} parent=23 // pred_region
          %s137 = sand.u32 %s25, 1
          %s138 = scalar_lea.sflag [#allocation3], %s137
          %s139 = sand.u32 %s25, 1
          %s140 = smul.addr %s139, 16
          %s141 = scalar_lea.vmem [#allocation2], %s140
          %s143 = ssub.s32 256, 256
          %144 = vsyncadd %s138, %s143
          %s145 = smul.addr %s15, 2
          %s146 = smul.addr %s145, 128
          %s147 = scalar_lea.hbm %s0, %s146
          %s149 = sshll.u32 %s141, 4
          %s150 = int_to_ptr.vmem [resolvable:$true] %s149
          %152 = dma.hbm_to_vmem [thread:$0]  %s147, 256, %s150, %s138
        $region28: #{tpu_custom_call.1} parent=23 // pred_fallthru
          _
      $region24: #{tpu_custom_call.1} parent=5 // pred_fallthru
        _
      %p153 = scmp.le.s32.totalorder 1, %s15
      %p154 = scmp.lt.s32.totalorder %s15, 3
      %p155 = pnand %p153, %p154
      %p156 = pneg %p155
      // Predicated region
      $region29: #{tpu_custom_call.1} parent=5 // pred_check
        _
      $region30: #{tpu_custom_call.1} parent=5 // pred_check_branch
        %158 = sbr.rel (%p155) target = $region32
      $region31: #{tpu_custom_call.1} parent=5 // pred_region
        %s159 = ssub.s32 %s15, 1
        %s160 = sand.u32 %s28, 1
        %s161 = scalar_lea.sflag [#allocation3], %s160
        %s162 = sand.u32 %s28, 1
        %s163 = smul.addr %s162, 16
        %s164 = scalar_lea.vmem [#allocation2], %s163
        // Predicated region
        $region33: #{tpu_custom_call.1} parent=31 // pred_check
          %p165 = pneg %p41
        $region34: #{tpu_custom_call.1} parent=31 // pred_check_branch
          %167 = sbr.rel (%p165) target = $region36
        $region35: #{tpu_custom_call.1} parent=31 // pred_region
          %168 = dma.done %s161, 256
        $region36: #{tpu_custom_call.1} parent=31 // pred_fallthru
          _
        %s169 = sand.u32 %s28, 1
        %s170 = scalar_lea.sflag [#allocation3], %s169
        %s171 = sand.u32 %s28, 1
        %s172 = smul.addr %s171, 16
        %s173 = scalar_lea.vmem [#allocation2], %s172
        %p174 = pneg %p41
        %p175 = pneg %p38
        %p176 = pneg %p62
        %p177 = pneg %p59
        %p178 = pneg %p83
        %p179 = pneg %p80
        %p180 = pneg %p109
        %p181 = pneg %p106
        %s182 = sand.u32 %s96, 1
        %s183 = scalar_lea.sflag [#allocation4], %s182
        %s184 = sand.u32 %s96, 1
        %s185 = smul.addr %s184, 16
        %s186 = scalar_lea.vmem [#allocation5], %s185
        %v187 = vld [vmem:[%s164] sm:$0xff]
        %v188 = vld [vmem:[%s164 + $0x8] sm:$0xff]
        %v189 = vadd.f32 %v187, %v188
        %190 = vadd.xlane.f32.xlu0 %v189
        %v191 = vpop.xlane.xlu0 %190
        %v192 = vrot.slane %v191, 4
        %v193 = vadd.f32 %v191, %v192
        %v194 = vrot.slane %v193, 2
        %v195 = vadd.f32 %v193, %v194
        %v196 = vrot.slane %v195, 1
        %v197 = vadd.f32 %v195, %v196
        %s198 = vtos %v197
        %v199 = vmul.f32 %v187, %v187
        %v200 = vmul.f32 %v188, %v188
        %v201 = vadd.f32 %v199, %v200
        %202 = vadd.xlane.f32.xlu0 %v201
        %v203 = vpop.xlane.xlu0 %202
        %v204 = vrot.slane %v203, 4
        %v205 = vadd.f32 %v203, %v204
        %v206 = vrot.slane %v205, 2
        %v207 = vadd.f32 %v205, %v206
        %v208 = vrot.slane %v207, 1
        %v209 = vadd.f32 %v207, %v208
        %s210 = vtos %v209
        %s211 = smul.f32 %s198, 0.00048828125
        %s212 = smul.f32 %s210, 0.00048828125
        %s213 = smul.f32 %s211, %s211
        %s214 = ssub.f32 %s212, %s213
        %s215 = smax.f32 %s214, 0.0
        %s216 = sadd.f32 %s215, 1e-07
        %v217 = vstv %s216
        %v218 = vrsqrt.pop %v217
        %s219 = vtos %v218
        %v220 = vld [vmem:[%s1] sm:$0xff]
        %v221 = vld [vmem:[%s2] sm:$0xff]
        %v222 = vstv %s219
        %v223 = vmul.f32 %v220, %v222
        %v224 = vstv %s211
        %v225 = vmul.f32 %v224, %v223
        %v226 = vsub.f32 %v221, %v225
        %228 = vset.pattern.permute.xlu0 0
        %229 = vperm.xlu0 %228, %v223
        %v230 = vpop.permute.xlu0 %229
        %v232 = vmul.f32 %v187, %v230
        %v233 = vmul.f32 %v188, %v230
        %235 = vset.pattern.permute.xlu0 0
        %236 = vperm.xlu0 %235, %v226
        %v237 = vpop.permute.xlu0 %236
        %v239 = vadd.f32 %v232, %v237
        %v240 = vadd.f32 %v233, %v237
        %241 = vst [vmem:[%s186] sm:$0xff] %v239
        %242 = vst [vmem:[%s186 + $0x8] sm:$0xff] %v240
        %s243 = sand.u32 %s96, 1
        %s244 = scalar_lea.sflag [#allocation4], %s243
        %s245 = sand.u32 %s96, 1
        %s246 = smul.addr %s245, 16
        %s247 = scalar_lea.vmem [#allocation5], %s246
        // Predicated region
        $region37: #{tpu_custom_call.1} parent=31 // pred_check
          %p248 = pneg %p106
        $region38: #{tpu_custom_call.1} parent=31 // pred_check_branch
          %250 = sbr.rel (%p248) target = $region40
        $region39: #{tpu_custom_call.1} parent=31 // pred_region
          %s252 = ssub.s32 256, 256
          %253 = vsyncadd %s244, %s252
          %s254 = smul.addr %s20, 2
          %s255 = smul.addr %s254, 128
          %s256 = scalar_lea.hbm %s3, %s255
          %s258 = sshll.u32 %s247, 4
          %s259 = int_to_ptr.vmem [resolvable:$true] %s258
          %261 = dma.vmem_to_hbm [thread:$0]  %s259, 256, %s256, %s244
        $region40: #{tpu_custom_call.1} parent=31 // pred_fallthru
          _
      $region32: #{tpu_custom_call.1} parent=5 // pred_fallthru
        _
      %p262 = scmp.le.s32.totalorder 2, %s15
      // Predicated region
      $region41: #{tpu_custom_call.1} parent=5 // pred_check
        %p263 = pneg %p262
      $region42: #{tpu_custom_call.1} parent=5 // pred_check_branch
        %265 = sbr.rel (%p263) target = $region44
      $region43: #{tpu_custom_call.1} parent=5 // pred_region
        %s266 = ssub.s32 %s15, 2
        // Predicated region
        $region45: #{tpu_custom_call.1} parent=43 // pred_check
          %p267 = pneg %p112
        $region46: #{tpu_custom_call.1} parent=43 // pred_check_branch
          %269 = sbr.rel (%p267) target = $region48
        $region47: #{tpu_custom_call.1} parent=43 // pred_region
          %s270 = sand.u32 %s97, 1
          %s271 = scalar_lea.sflag [#allocation4], %s270
          %s272 = sand.u32 %s97, 1
          %s273 = smul.addr %s272, 16
          %s274 = scalar_lea.vmem [#allocation5], %s273
          %275 = dma.done %s271, 256
        $region48: #{tpu_custom_call.1} parent=43 // pred_fallthru
          _
      $region44: #{tpu_custom_call.1} parent=5 // pred_fallthru
        _
    $region6: #{tpu_custom_call.1} parent=1 // loop_footer
      %s19 = sadd.s32 1, %s15
    $region7: #{tpu_custom_call.1} parent=1 // loop_footer_branch
      %14 = sbr.rel target = $region3
    $region8: #{tpu_custom_call.1} parent=1 // loop_exit
      _
    %276 = vsyncpa [#allocation3], 1
    %s277 = scalar_lea.sflag [#allocation3], 1
    %278 = vsyncpa %s277, 1
    %279 = vsyncpa [#allocation4], 1
    %s280 = scalar_lea.sflag [#allocation4], 1
    %281 = vsyncpa %s280, 1

</llo_original>
